<compile_context>
chip_gen: v7x
topology: tpu7x:2x2x1
jax: 0.10.0
libtpu: 0.0.40
codegen_flags: <defaults>
</compile_context>

<pallas_src>
import functools
import math

import jax
import jax.numpy as jnp
from jax.experimental import pallas as pl
from jax.experimental.pallas import tpu as pltpu


def _round_up(x, m):
    return (x + m - 1) // m * m


def conv_lora_kernel(x_ref, w_ref, b_ref, o_ref, *, K, WP, RT, OCP):
    """One (image, row-tile) grid step.

    x_ref : (RT_IN, K*C)     bf16  kw-packed input rows incl. (K-1)*WP halo
    w_ref : (K, K*C, 2*OCP)  bf16  per-kh taps; cols [0:OCP)=base W, [OCP:)=LoRA delta
    b_ref : (1, OCP)         f32   bias
    o_ref : (RT, OCP)        bf16  output rows (full pitch; pad cols dropped later)
    """
    ps = None
    for kh in range(K):
        slab = x_ref[pl.ds(kh * WP, RT), :]                     # (RT, K*C)  bf16
        d = jnp.dot(slab, w_ref[kh],
                    preferred_element_type=jnp.float32)         # (RT, 2*OCP) f32
        ps = d if ps is None else ps + d                        # partials in vregs
    out = ps[:, :OCP] + ps[:, OCP:] + b_ref[...]                # base + LoRA + bias (f32)
    o_ref[...] = out.astype(o_ref.dtype)


def conv_lora_forward(x, conv_w, conv_b, lora_A, lora_B, scaling, *, row_tile=512):
    """ConvLoRA.forward with r > 0 and not merged.

    Implements nn.Conv2d defaults only: stride=1, padding=0, dilation=1, groups=1.
    row_tile = output rows per grid step; ~256-512 fits v7x (64 MiB VMEM),
    v5e/v6e (128 MiB VMEM) can use 1024-2048 for large images.
    """
    n, c_in, h, w = x.shape
    oc, wc_in, k, kw_dim = conv_w.shape
    assert wc_in == c_in and kw_dim == k, "groups != 1 / non-square kernel unsupported"
    # TODO(synk): stride/padding/dilation/groups other than Conv2d defaults (the
    # module's **kwargs path) are not implemented.
    oh, ow = h - k + 1, w - k + 1

    # ---- weights: base and LoRA-delta kept as two separate bf16 streams -------
    delta = (lora_B @ lora_A).reshape(conv_w.shape) * scaling           # OIHW f32
    ocp = _round_up(oc, 128)

    def to_taps(w_oihw):                     # -> (K, K*C, OCP), rows ordered (kw, c)
        m = w_oihw.transpose(2, 3, 1, 0).reshape(k, k * c_in, oc)
        return jnp.pad(m, ((0, 0), (0, 0), (0, ocp - oc)))

    # cols [0:OCP) = frozen conv weight, [OCP:2*OCP) = scaling*(B@A); summed in
    # f32 in-kernel so a small LoRA delta is not lost to bf16(W + delta).
    w_cat = jnp.concatenate([to_taps(conv_w), to_taps(delta)],
                            axis=-1).astype(jnp.bfloat16)               # (K, K*C, 2*OCP)
    bias = jnp.pad(conv_b, (0, ocp - oc)).reshape(1, ocp).astype(jnp.float32)

    # ---- kw-packed, pitch-aligned input ---------------------------------------
    wp = _round_up(w, 8)                     # row pitch -> kh shifts are 8-aligned
    kc = k * c_in
    rows = oh * wp                           # full-pitch output rows per image
    rt = _round_up(min(row_tile, _round_up(rows, 8)), 8)
    t_tiles = (rows + rt - 1) // rt
    rows_pad = t_tiles * rt
    rt_in = _round_up(rt + (k - 1) * wp, 8)  # rows one tile reads (incl. kh halo)
    rows_total = (t_tiles - 1) * rt + rt_in
    rows_xf = rows_total + (k - 1)
    # Halo / coverage invariants (keep the wrap-around-column trick honest).
    assert rt_in >= rt + (k - 1) * wp
    assert rows_xf >= rows_total + (k - 1) and rows_pad >= rows

    x_nhwc = jnp.pad(x.transpose(0, 2, 3, 1), ((0, 0), (0, 0), (0, wp - w), (0, 0)))
    xf = x_nhwc.reshape(n, h * wp, c_in)
    xf = jnp.pad(xf, ((0, 0), (0, max(0, rows_xf - h * wp)), (0, 0)))
    # xp[r, kw*C + c] = x[row r + kw, c]   (zero beyond the image)
    xp = jnp.concatenate([xf[:, s:s + rows_total, :] for s in range(k)],
                         axis=-1).astype(jnp.bfloat16)                  # (N, rows_total, K*C)
    # Pre-windowed overlapping row tiles (halo duplicated) so BlockSpec
    # pipelining stays fully automatic:  (N, T, RT_IN, K*C)
    xw = jnp.stack([xp[:, t * rt:t * rt + rt_in, :] for t in range(t_tiles)], axis=1)

    # ---- generation-aware scoped-VMEM limit ------------------------------------
    try:
        vmem_cap = getattr(pltpu.get_tpu_info(), "vmem_capacity_bytes",
                           64 * 1024 * 1024)
    except Exception:
        vmem_cap = 64 * 1024 * 1024
    vmem_limit = int(min(100 * 1024 * 1024,
                         max(32 * 1024 * 1024, vmem_cap * 3 // 4)))

    out_full = pl.pallas_call(
        functools.partial(conv_lora_kernel, K=k, WP=wp, RT=rt, OCP=ocp),
        out_shape=jax.ShapeDtypeStruct((n, rows_pad, ocp), jnp.bfloat16),
        grid=(n, t_tiles),
        in_specs=[
            pl.BlockSpec((None, None, rt_in, kc), lambda i, t: (i, t, 0, 0)),  # rows
            pl.BlockSpec((k, kc, 2 * ocp), lambda i, t: (0, 0, 0)),            # weights
            pl.BlockSpec((1, ocp), lambda i, t: (0, 0)),                       # bias
        ],
        out_specs=pl.BlockSpec((None, rt, ocp), lambda i, t: (i, t, 0)),
        compiler_params=pltpu.CompilerParams(
            dimension_semantics=("parallel", "parallel"),   # megacore over (image, tile)
            vmem_limit_bytes=vmem_limit),
    )(xw, w_cat, bias)

    # Drop pitch/wrap columns and channel padding; back to the module's NCHW, f32.
    out = out_full[:, :rows, :oc].reshape(n, oh, wp, oc)[:, :, :ow, :]
    # TODO(synk): fold the NHWC->NCHW transpose into the consumer if it allows NHWC.
    return out.transpose(0, 3, 1, 2).astype(jnp.float32)


if __name__ == "__main__":
    # ConvLoRA(nn.Conv2d, in_channels=4, out_channels=8, kernel_size=3,
    #          r=2, lora_alpha=1, lora_dropout=0.0), eval / not merged.
    N, C_IN, H, W = 2, 4, 16, 16
    OC, K, R, LORA_ALPHA = 8, 3, 2, 1
    scaling = LORA_ALPHA / R

    key = jax.random.PRNGKey(0)
    kx, kw_, kb, ka, kbb = jax.random.split(key, 5)

    fan_in = C_IN * K * K
    bound = 1.0 / math.sqrt(fan_in)
    x = jax.random.normal(kx, (N, C_IN, H, W), jnp.float32)
    conv_w = jax.random.uniform(kw_, (OC, C_IN, K, K), jnp.float32, -bound, bound)
    conv_b = jax.random.uniform(kb, (OC,), jnp.float32, -bound, bound)
    # lora_B is zero-init in reset_parameters(); use small random values so the
    # LoRA branch contributes non-trivially to the check.
    a_bound = 1.0 / math.sqrt(C_IN * K)
    lora_A = jax.random.uniform(ka, (R * K, C_IN * K), jnp.float32, -a_bound, a_bound)
    lora_B = 0.1 * jax.random.normal(kbb, (OC * K, R * K), jnp.float32)

    fwd = jax.jit(conv_lora_forward, static_argnames=("row_tile",))
    # row_tile=128 -> 2 row tiles x 2 images = 4 parallel grid steps.
    out = jax.block_until_ready(
        fwd(x, conv_w, conv_b, lora_A, lora_B, scaling, row_tile=128))

    # Plain-JAX f32 reference for the exact same math.
    w_ref = conv_w + (lora_B @ lora_A).reshape(conv_w.shape) * scaling
    ref = jax.lax.conv_general_dilated(
        x, w_ref, window_strides=(1, 1), padding="VALID",
        dimension_numbers=("NCHW", "OIHW", "NCHW")) + conv_b[None, :, None, None]

    assert out.shape == (N, OC, H - K + 1, W - K + 1)
    # bf16 MXU operands + bf16 writeback (f32 accumulation) -> relaxed tolerance.
    assert jnp.allclose(out, ref, atol=5e-2, rtol=5e-2), "mismatch vs reference"

    # Single-tile path (row_tile >= all rows) must agree with the tiled path.
    out1 = jax.block_until_ready(
        fwd(x, conv_w, conv_b, lora_A, lora_B, scaling, row_tile=512))
    assert jnp.allclose(out, out1, atol=1e-5, rtol=0), "row-tiling mismatch"
    print("KERNEL_OK")
</pallas_src>

<mosaic_0001>
module attributes {stable_mosaic.version = 11 : i64} {
  func.func @conv_lora_kernel(%arg0: i32, %arg1: i32, %arg2: memref<1x1x160x12xbf16, #tpu.memory_space<vmem>>, %arg3: memref<3x12x256xbf16, #tpu.memory_space<vmem>>, %arg4: memref<1x128xf32, #tpu.memory_space<vmem>>, %arg5: memref<1x128x128xbf16, #tpu.memory_space<vmem>>) attributes {dimension_semantics = [#tpu.dimension_semantics<parallel>, #tpu.dimension_semantics<parallel>], iteration_bounds = array<i64: 2, 2>, scalar_prefetch = 0 : i64, scratch_operands = 0 : i64, tpu.core_type = #tpu.core_type<tc>, window_params = [{transform_indices = @transform_0, window_bounds = array<i64: 1, 1, 160, 12>}, {pipeline_mode = #tpu.pipeline_mode<synchronous>, transform_indices = @transform_1, window_bounds = array<i64: 3, 12, 256>}, {pipeline_mode = #tpu.pipeline_mode<synchronous>, transform_indices = @transform_2, window_bounds = array<i64: 1, 128>}, {transform_indices = @transform_3, window_bounds = array<i64: 1, 128, 128>}]} {
    %c0 = arith.constant 0 : index
    %c0_0 = arith.constant 0 : index
    %c0_1 = arith.constant 0 : index
    %c0_2 = arith.constant 0 : index
    %0 = vector.load %arg2[%c0, %c0_0, %c0_1, %c0_2] : memref<1x1x160x12xbf16, #tpu.memory_space<vmem>>, vector<1x1x128x12xbf16>
    %1 = vector.shape_cast %0 : vector<1x1x128x12xbf16> to vector<128x12xbf16>
    %c0_3 = arith.constant 0 : index
    %c0_4 = arith.constant 0 : index
    %c0_5 = arith.constant 0 : index
    %2 = vector.load %arg3[%c0_3, %c0_4, %c0_5] : memref<3x12x256xbf16, #tpu.memory_space<vmem>>, vector<1x12x256xbf16>
    %3 = vector.shape_cast %2 : vector<1x12x256xbf16> to vector<12x256xbf16>
    %cst = arith.constant dense<0.000000e+00> : vector<128x256xf32>
    %4 = tpu.matmul %1, %3, %cst {dimension_numbers = #tpu.dot_dimension_numbers<[1], [0], [0], [1], [0, 0, 1, 1], [], []>} : vector<128x12xbf16>, vector<12x256xbf16>, vector<128x256xf32> -> vector<128x256xf32>
    %c0_6 = arith.constant 0 : index
    %c0_7 = arith.constant 0 : index
    %c16 = arith.constant 16 : index
    %c0_8 = arith.constant 0 : index
    %5 = vector.load %arg2[%c0_6, %c0_7, %c16, %c0_8] : memref<1x1x160x12xbf16, #tpu.memory_space<vmem>>, vector<1x1x128x12xbf16>
    %6 = vector.shape_cast %5 : vector<1x1x128x12xbf16> to vector<128x12xbf16>
    %c1 = arith.constant 1 : index
    %c0_9 = arith.constant 0 : index
    %c0_10 = arith.constant 0 : index
    %7 = vector.load %arg3[%c1, %c0_9, %c0_10] : memref<3x12x256xbf16, #tpu.memory_space<vmem>>, vector<1x12x256xbf16>
    %8 = vector.shape_cast %7 : vector<1x12x256xbf16> to vector<12x256xbf16>
    %cst_11 = arith.constant dense<0.000000e+00> : vector<128x256xf32>
    %9 = tpu.matmul %6, %8, %cst_11 {dimension_numbers = #tpu.dot_dimension_numbers<[1], [0], [0], [1], [0, 0, 1, 1], [], []>} : vector<128x12xbf16>, vector<12x256xbf16>, vector<128x256xf32> -> vector<128x256xf32>
    %10 = arith.addf %4, %9 : vector<128x256xf32>
    %c0_12 = arith.constant 0 : index
    %c0_13 = arith.constant 0 : index
    %c32 = arith.constant 32 : index
    %c0_14 = arith.constant 0 : index
    %11 = vector.load %arg2[%c0_12, %c0_13, %c32, %c0_14] : memref<1x1x160x12xbf16, #tpu.memory_space<vmem>>, vector<1x1x128x12xbf16>
    %12 = vector.shape_cast %11 : vector<1x1x128x12xbf16> to vector<128x12xbf16>
    %c2 = arith.constant 2 : index
    %c0_15 = arith.constant 0 : index
    %c0_16 = arith.constant 0 : index
    %13 = vector.load %arg3[%c2, %c0_15, %c0_16] : memref<3x12x256xbf16, #tpu.memory_space<vmem>>, vector<1x12x256xbf16>
    %14 = vector.shape_cast %13 : vector<1x12x256xbf16> to vector<12x256xbf16>
    %cst_17 = arith.constant dense<0.000000e+00> : vector<128x256xf32>
    %15 = tpu.matmul %12, %14, %cst_17 {dimension_numbers = #tpu.dot_dimension_numbers<[1], [0], [0], [1], [0, 0, 1, 1], [], []>} : vector<128x12xbf16>, vector<12x256xbf16>, vector<128x256xf32> -> vector<128x256xf32>
    %16 = arith.addf %10, %15 : vector<128x256xf32>
    %17 = vector.extract_strided_slice %16 {offsets = [0, 0], sizes = [128, 128], strides = [1, 1]} : vector<128x256xf32> to vector<128x128xf32>
    %18 = vector.extract_strided_slice %16 {offsets = [0, 128], sizes = [128, 128], strides = [1, 1]} : vector<128x256xf32> to vector<128x128xf32>
    %19 = arith.addf %17, %18 : vector<128x128xf32>
    %c0_18 = arith.constant 0 : index
    %c0_19 = arith.constant 0 : index
    %20 = vector.load %arg4[%c0_18, %c0_19] : memref<1x128xf32, #tpu.memory_space<vmem>>, vector<1x128xf32>
    %21 = vector.broadcast %20 : vector<1x128xf32> to vector<128x128xf32>
    %22 = arith.addf %19, %21 : vector<128x128xf32>
    %23 = arith.truncf %22 : vector<128x128xf32> to vector<128x128xbf16>
    %c0_20 = arith.constant 0 : index
    %c0_21 = arith.constant 0 : index
    %c0_22 = arith.constant 0 : index
    %24 = vector.load %arg5[%c0_20, %c0_21, %c0_22] : memref<1x128x128xbf16, #tpu.memory_space<vmem>>, vector<1x128x128xbf16>
    %25 = vector.shape_cast %24 : vector<1x128x128xbf16> to vector<128x128xbf16>
    %26 = vector.shape_cast %23 : vector<128x128xbf16> to vector<1x128x128xbf16>
    tpu.vector_store %arg5[%c0_20, %c0_21, %c0_22], %26 {strides = array<i32>} : memref<1x128x128xbf16, #tpu.memory_space<vmem>>, vector<1x128x128xbf16>,
    return
  }
  func.func @transform_0(%arg0: i32, %arg1: i32) -> (i32, i32, i32, i32) {
    %c0_i32 = arith.constant 0 : i32
    %c0_i32_0 = arith.constant 0 : i32
    %c0_i32_1 = arith.constant 0 : i32
    return %arg0, %arg1, %c0_i32, %c0_i32_0 : i32, i32, i32, i32
  }
  func.func @transform_1(%arg0: i32, %arg1: i32) -> (i32, i32, i32) {
    %c0_i32 = arith.constant 0 : i32
    %c0_i32_0 = arith.constant 0 : i32
    %c0_i32_1 = arith.constant 0 : i32
    %c0_i32_2 = arith.constant 0 : i32
    return %c0_i32, %c0_i32_0, %c0_i32_1 : i32, i32, i32
  }
  func.func @transform_2(%arg0: i32, %arg1: i32) -> (i32, i32) {
    %c0_i32 = arith.constant 0 : i32
    %c0_i32_0 = arith.constant 0 : i32
    %c0_i32_1 = arith.constant 0 : i32
    return %c0_i32, %c0_i32_0 : i32, i32
  }
  func.func @transform_3(%arg0: i32, %arg1: i32) -> (i32, i32, i32) {
    %c0_i32 = arith.constant 0 : i32
    %c0_i32_0 = arith.constant 0 : i32
    return %arg0, %arg1, %c0_i32 : i32, i32, i32
  }
}

</mosaic_0001>

<llo_original>
// kernel: conv_lora_forward.1
$region0: #{conv_lora_forward.1}
  #allocation0 [shape = 'u32[]', space=smem, size = 0x4, offset = 0x4, fixed_abs, tag = 'smem constant byte address 0x4 - core index']
  #allocation1 [shape = 'u32[144,128]{1,0:T(1,128)}', space=vmem, size = 0x12000, scoped, tag = 'internal scratch']
  %s0 = inlined_call_operand.vmem [shape: bf16[2,2,160,12], index: 0, kind: input, shape index: {}]
  %s1 = inlined_call_operand.vmem [shape: bf16[3,12,256], index: 1, kind: input, shape index: {}]
  %s2 = inlined_call_operand.vmem [shape: f32[1,128], index: 2, kind: input, shape index: {}]
  %s3 = inlined_call_operand.vmem [shape: bf16[2,256,128], index: 3, kind: output, shape index: {}]
  %s4 = sld [smem:[#allocation0]]
  $region45: #{conv_lora_forward.1} parent=0
    _
  %s6 = ssub.s32 1, %s4
  %s7 = scalar_select 0, %s6, %s4
  loop: start=0, step=1, limit=6
  $region2: #{conv_lora_forward.1} parent=0 // loop_pre_header
    _
  $region3: #{conv_lora_forward.1} parent=0 // loop_header
    %s9 = sphi 0, %s13
    %p10 = scmp.ge.s32.totalorder %s9, 6
    %s16 = sphi 0, %s28
    %s17 = sphi 0, %s24
    %s18 = sphi 0, %s16
    %s19 = sphi 0, %s17
    %s20 = sphi 0, %s18
    %s21 = sphi 0, %s19
    %s33 = sphi 0, %s35
    %s36 = sphi 0, %s33
    %s37 = sphi 0, %s36
    %s53 = sphi 0, %s37
    %s57 = sphi 0, %s57
    %s59 = sphi 0, %s57
    %s60 = sphi 0, %s59
    %s74 = sphi 0, %s60
    %s78 = sphi 0, %s78
    %s80 = sphi 0, %s78
    %s81 = sphi 0, %s80
    %s95 = sphi 0, %s81
    %s103 = sphi 0, %s105
    %s106 = sphi 0, %s103
    %s107 = sphi 0, %s106
    %s123 = sphi 0, %s107
  $region4: #{conv_lora_forward.1} parent=0 // loop_header_branch
    %12 = sbr.rel (%p10) target = $region8
  $region5: #{conv_lora_forward.1} parent=0 // loop_body
    %s14 = ssub.s32 %s9, 1
    %s15 = ssub.s32 %s9, 2
    %s22 = sadd.s32 1, %s17
    %p23 = scmp.ge.s32.totalorder %s22, 2
    %s24 = scalar_select %p23, 0, %s22
    %s25 = sadd.s32 1, %s16
    %s26 = scalar_select %p23, %s25, %s16
    %p27 = scmp.ge.s32.totalorder %s26, 2
    %s28 = scalar_select %p27, 0, %s26
    %s29 = ssub.s32 %s16, %s28
    %s30 = ssub.s32 %s17, %s24
    %s31 = sor.u32 %s29, %s30
    %p32 = scmp.eq.s32.totalorder %s31, 0
    %s34 = sadd.s32 %s33, 1
    %s35 = scalar_select %p32, %s33, %s34
    %p38 = pneg %p32
    %p39 = scmp.eq.s32.totalorder %s9, 3
    %p40 = por %p38, %p39
    %p41 = scmp.ne.s32.totalorder %s33, %s36
    %p42 = scmp.eq.s32.totalorder %s9, 0
    %p43 = por %p41, %p42
    %p44 = scmp.ne.s32.totalorder %s33, %s36
    %p45 = scmp.eq.s32.totalorder %s14, 3
    %p46 = por %p44, %p45
    %p47 = scmp.ne.s32.totalorder %s36, %s37
    %p48 = scmp.eq.s32.totalorder %s14, 0
    %p49 = por %p47, %p48
    %p50 = scmp.ne.s32.totalorder %s36, %s37
    %p51 = scmp.eq.s32.totalorder %s15, 3
    %p52 = por %p50, %p51
    %p54 = scmp.ne.s32.totalorder %s37, %s53
    %p55 = scmp.eq.s32.totalorder %s15, 0
    %p56 = por %p54, %p55
    %s58 = sadd.s32 %s57, 1
    %p61 = scmp.eq.s32.totalorder %s9, 3
    %p62 = scmp.ne.s32.totalorder %s57, %s59
    %p63 = scmp.eq.s32.totalorder %s9, 0
    %p64 = por %p62, %p63
    %p65 = scmp.ne.s32.totalorder %s57, %s59
    %p66 = scmp.eq.s32.totalorder %s14, 3
    %p67 = por %p65, %p66
    %p68 = scmp.ne.s32.totalorder %s59, %s60
    %p69 = scmp.eq.s32.totalorder %s14, 0
    %p70 = por %p68, %p69
    %p71 = scmp.ne.s32.totalorder %s59, %s60
    %p72 = scmp.eq.s32.totalorder %s15, 3
    %p73 = por %p71, %p72
    %p75 = scmp.ne.s32.totalorder %s60, %s74
    %p76 = scmp.eq.s32.totalorder %s15, 0
    %p77 = por %p75, %p76
    %s79 = sadd.s32 %s78, 1
    %p82 = scmp.eq.s32.totalorder %s9, 3
    %p83 = scmp.ne.s32.totalorder %s78, %s80
    %p84 = scmp.eq.s32.totalorder %s9, 0
    %p85 = por %p83, %p84
    %p86 = scmp.ne.s32.totalorder %s78, %s80
    %p87 = scmp.eq.s32.totalorder %s14, 3
    %p88 = por %p86, %p87
    %p89 = scmp.ne.s32.totalorder %s80, %s81
    %p90 = scmp.eq.s32.totalorder %s14, 0
    %p91 = por %p89, %p90
    %p92 = scmp.ne.s32.totalorder %s80, %s81
    %p93 = scmp.eq.s32.totalorder %s15, 3
    %p94 = por %p92, %p93
    %p96 = scmp.ne.s32.totalorder %s81, %s95
    %p97 = scmp.eq.s32.totalorder %s15, 0
    %p98 = por %p96, %p97
    %s99 = ssub.s32 %s16, %s28
    %s100 = ssub.s32 %s17, %s24
    %s101 = sor.u32 %s99, %s100
    %p102 = scmp.eq.s32.totalorder %s101, 0
    %s104 = sadd.s32 %s103, 1
    %s105 = scalar_select %p102, %s103, %s104
    %p108 = pneg %p102
    %p109 = scmp.eq.s32.totalorder %s9, 3
    %p110 = por %p108, %p109
    %p111 = scmp.ne.s32.totalorder %s103, %s106
    %p112 = scmp.eq.s32.totalorder %s9, 0
    %p113 = por %p111, %p112
    %p114 = scmp.ne.s32.totalorder %s103, %s106
    %p115 = scmp.eq.s32.totalorder %s14, 3
    %p116 = por %p114, %p115
    %p117 = scmp.ne.s32.totalorder %s106, %s107
    %p118 = scmp.eq.s32.totalorder %s14, 0
    %p119 = por %p117, %p118
    %p120 = scmp.ne.s32.totalorder %s106, %s107
    %p121 = scmp.eq.s32.totalorder %s15, 3
    %p122 = por %p120, %p121
    %p124 = scmp.ne.s32.totalorder %s107, %s123
    %p125 = scmp.eq.s32.totalorder %s15, 0
    %p126 = por %p124, %p125
    %p127 = scmp.le.s32.totalorder 1, %s9
    %p128 = scmp.lt.s32.totalorder %s9, 5
    %p129 = pnand %p127, %p128
    %p130 = pneg %p129
    // Predicated region
    $region9: #{conv_lora_forward.1} parent=5 // pred_check
      _
    $region10: #{conv_lora_forward.1} parent=5 // pred_check_branch
      %132 = sbr.rel (%p129) target = $region12
    $region11: #{conv_lora_forward.1} parent=5 // pred_region
      %s133 = ssub.s32 %s9, 1
      // Predicated region
      $region13: #{conv_lora_forward.1} parent=11 // pred_check
        %p134 = pneg %p70
      $region14: #{conv_lora_forward.1} parent=11 // pred_check_branch
        %136 = sbr.rel (%p134) target = $region16
      $region15: #{conv_lora_forward.1} parent=11 // pred_region
        _
      $region16: #{conv_lora_forward.1} parent=11 // pred_fallthru
        _
      // Predicated region
      $region17: #{conv_lora_forward.1} parent=11 // pred_check
        %p137 = pneg %p91
      $region18: #{conv_lora_forward.1} parent=11 // pred_check_branch
        %139 = sbr.rel (%p137) target = $region20
      $region19: #{conv_lora_forward.1} parent=11 // pred_region
        _
      $region20: #{conv_lora_forward.1} parent=11 // pred_fallthru
        _
    $region12: #{conv_lora_forward.1} parent=5 // pred_fallthru
      _
    %p140 = scmp.lt.s32.totalorder %s9, 4
    // Predicated region
    $region21: #{conv_lora_forward.1} parent=5 // pred_check
      %p141 = pneg %p140
    $region22: #{conv_lora_forward.1} parent=5 // pred_check_branch
      %143 = sbr.rel (%p141) target = $region24
    $region23: #{conv_lora_forward.1} parent=5 // pred_region
      // Predicated region
      $region25: #{conv_lora_forward.1} parent=23 // pred_check
        %p144 = pneg %p43
      $region26: #{conv_lora_forward.1} parent=23 // pred_check_branch
        %146 = sbr.rel (%p144) target = $region28
      $region27: #{conv_lora_forward.1} parent=23 // pred_region
        %p147 = scmp.lt.s32.totalorder %s16, 1
        %s148 = scalar_select %p147, %s16, 1
        %p149 = scmp.lt.s32.totalorder %s17, 1
        %s150 = scalar_select %p149, %s17, 1
        %s151 = smul.addr %s150, 20
        %s152 = smul.addr %s148, 40
        %s153 = sadd.s32 %s151, %s152
        %s154 = smul.addr %s153, 4
        %s155 = scalar_lea.vmem %s0, %s154
      $region28: #{conv_lora_forward.1} parent=23 // pred_fallthru
        _
    $region24: #{conv_lora_forward.1} parent=5 // pred_fallthru
      _
    %p156 = scmp.le.s32.totalorder 1, %s9
    %p157 = scmp.lt.s32.totalorder %s9, 5
    %p158 = pnand %p156, %p157
    %p159 = pneg %p158
    // Predicated region
    $region29: #{conv_lora_forward.1} parent=5 // pred_check
      _
    $region30: #{conv_lora_forward.1} parent=5 // pred_check_branch
      %161 = sbr.rel (%p158) target = $region32
    $region31: #{conv_lora_forward.1} parent=5 // pred_region
      %s162 = ssub.s32 %s9, 1
      %p163 = scmp.lt.s32.totalorder %s18, 1
      %s164 = scalar_select %p163, %s18, 1
      %p165 = scmp.lt.s32.totalorder %s19, 1
      %s166 = scalar_select %p165, %s19, 1
      %s167 = smul.addr %s166, 20
      %s168 = smul.addr %s164, 40
      %s169 = sadd.s32 %s167, %s168
      %s170 = smul.addr %s169, 4
      %s171 = scalar_lea.vmem %s0, %s170
      %p172 = pneg %p49
      %p173 = pneg %p46
      %p174 = pneg %p70
      %p175 = pneg %p67
      %p176 = pneg %p91
      %p177 = pneg %p88
      %p178 = pneg %p119
      %p179 = pneg %p116
      %s180 = smul.u32 16, %s19
      %p181 = scmp.lt.s32.totalorder %s18, 1
      %s182 = scalar_select %p181, %s18, 1
      %p183 = scmp.lt.s32.totalorder %s180, 31
      %s184 = scalar_select %p183, %s180, 31
      %s185 = smul.addr %s182, 32
      %s186 = sadd.s32 %s184, %s185
      %s187 = smul.addr %s186, 4
      %s188 = scalar_lea.vmem %s3, %s187
      %p189 = scmp.lt.s32.totalorder %s18, 1
      %s190 = scalar_select %p189, %s18, 1
      %p191 = scmp.lt.s32.totalorder %s19, 1
      %s192 = scalar_select %p191, %s19, 1
      %s193 = smul.addr %s192, 20
      %s194 = smul.addr %s190, 40
      %s195 = sadd.s32 %s193, %s194
      %s196 = smul.addr %s195, 4
      %s197 = scalar_lea.vmem %s0, %s196
      %s198 = smul.u32 16, %s19
      %p199 = scmp.lt.s32.totalorder %s18, 1
      %s200 = scalar_select %p199, %s18, 1
      %p201 = scmp.lt.s32.totalorder %s198, 31
      %s202 = scalar_select %p201, %s198, 31
      %s203 = smul.addr %s200, 32
      %s204 = sadd.s32 %s202, %s203
      %s205 = smul.addr %s204, 4
      %s206 = scalar_lea.vmem %s3, %s205
      %s207 = smul.u32 16, %s19
      %v209 = vld [vmem:[%s197] sm:$0xf]
      %v210 = vld [vmem:[%s197 + $0x4] sm:$0xf]
      %v211 = vld [vmem:[%s197 + $0x8] sm:$0xf]
      %v212 = vld [vmem:[%s197 + $0xc] sm:$0xf]
      %v213 = vld [vmem:[%s197 + $0x10] sm:$0xf]
      %v214 = vld [vmem:[%s197 + $0x14] sm:$0xf]
      %v215 = vld [vmem:[%s197 + $0x18] sm:$0xf]
      %v216 = vld [vmem:[%s197 + $0x1c] sm:$0xf]
      %v217 = vld [vmem:[%s197 + $0x20] sm:$0xf]
      %v218 = vld [vmem:[%s197 + $0x24] sm:$0xf]
      %v219 = vld [vmem:[%s197 + $0x28] sm:$0xf]
      %v220 = vld [vmem:[%s197 + $0x2c] sm:$0xf]
      %v221 = vld [vmem:[%s197 + $0x30] sm:$0xf]
      %v222 = vld [vmem:[%s197 + $0x34] sm:$0xf]
      %v223 = vld [vmem:[%s197 + $0x38] sm:$0xf]
      %v224 = vld [vmem:[%s197 + $0x3c] sm:$0xf]
      %v225 = vld [vmem:[%s1] sm:$0xff]
      %v226 = vld [vmem:[%s1 + $0x8] sm:$0x33]
      %v227 = vld [vmem:[%s197 + $0x40] sm:$0xf]
      %v228 = vld [vmem:[%s197 + $0x44] sm:$0xf]
      %s229 = scalar_lea.vmem %s1, 16
      %v230 = vld [vmem:[%s229] sm:$0xff]
      %v231 = vld [vmem:[%s229 + $0x8] sm:$0x33]
      %v248 = vunpack.c.l.b16 %v211
      %v249 = vunpack.c.l.b16 %v212
      %v250 = vunpack.c.l.b16 %v213
      %v251 = vunpack.c.l.b16 %v214
      %v252 = vunpack.c.l.b16 %v215
      %v253 = vunpack.c.l.b16 %v216
      %v254 = vunpack.c.l.b16 %v217
      %v255 = vunpack.c.l.b16 %v218
      %v256 = vunpack.c.l.b16 %v219
      %v257 = vunpack.c.l.b16 %v220
      %v258 = vunpack.c.l.b16 %v221
      %v259 = vunpack.c.l.b16 %v222
      %v260 = vunpack.c.l.b16 %v223
      %v261 = vunpack.c.l.b16 %v224
      %v262 = vunpack.c.l.b16 %v227
      %v263 = vunpack.c.l.b16 %v228
      %v264 = vpack.c.b16 %v249, %v248
      %v265 = vpack.c.b16 %v251, %v250
      %v266 = vpack.c.b16 %v253, %v252
      %v267 = vpack.c.b16 %v255, %v254
      %v268 = vpack.c.b16 %v257, %v256
      %v269 = vpack.c.b16 %v259, %v258
      %v270 = vpack.c.b16 %v261, %v260
      %v271 = vpack.c.b16 %v263, %v262
      %v274 = vunpack.c.l.b16 %v230
      %v275 = vunpack.c.h.b16 %v230
      %v276 = vunpack.c.l.b16 %v231
      %v277 = vunpack.c.h.b16 %v231
      %v278 = vpack.c.b16 %v276, %v274
      %v279 = vpack.c.b16 %v277, %v275
      %vm280 = vcmask 97280
      %v282 = vsel %vm280, %v264, 0
      %v285 = vsel %vm280, %v265, 0
      %v288 = vsel %vm280, %v266, 0
      %v291 = vsel %vm280, %v267, 0
      %v294 = vsel %vm280, %v268, 0
      %v297 = vsel %vm280, %v269, 0
      %v300 = vsel %vm280, %v270, 0
      %v303 = vsel %vm280, %v271, 0
      %vm305 = vcmask 1045504
      %v307 = vsel %vm305, %v278, 0
      %v310 = vsel %vm305, %v279, 0
      %312 = vmatprep.subr.bf16.mxu0 %v310
      %313 = vmatpush1.bf16.msra.mxu0 %v307
      %314 = vmatprep.subr.bf16.mxu0 0
      %315 = vmatpush1.bf16.msra.mxu0 0
      %316 = vmatprep.subr.bf16.mxu0 0
      %317 = vmatpush1.bf16.msra.mxu0 0
      %318 = vmatprep.subr.bf16.mxu0 0
      %319 = vmatpush1.bf16.msra.mxu0 0
      %320 = vmatprep.subr.bf16.mxu0 0
      %321 = vmatpush1.bf16.msra.mxu0 0
      %322 = vmatprep.subr.bf16.mxu0 0
      %323 = vmatpush1.bf16.msra.mxu0 0
      %324 = vmatprep.subr.bf16.mxu0 0
      %325 = vmatpush1.bf16.msra.mxu0 0
      %326 = vmatprep.subr.bf16.mxu0 0
      %327 = vmatpush1.bf16.msra.mxu0 0
      %328 = vmatprep.subr.bf16.mxu0 0
      %329 = vmatpush1.bf16.msra.mxu0 0
      %330 = vmatprep.subr.bf16.mxu0 0
      %331 = vmatpush1.bf16.msra.mxu0 0
      %332 = vmatprep.subr.bf16.mxu0 0
      %333 = vmatpush1.bf16.msra.mxu0 0
      %334 = vmatprep.subr.bf16.mxu0 0
      %335 = vmatpush1.bf16.msra.mxu0 0
      %336 = vmatprep.subr.bf16.mxu0 0
      %337 = vmatpush1.bf16.msra.mxu0 0
      %338 = vmatprep.subr.bf16.mxu0 0
      %339 = vmatpush1.bf16.msra.mxu0 0
      %340 = vmatprep.subr.bf16.mxu0 0
      %341 = vmatpush1.bf16.msra.mxu0 0
      %342 = vmatprep.subr.bf16.mxu0 0
      %343 = vmatpush1.bf16.msra.mxu0 0
      %344 = vmatprep.mubr.bf16.mxu0 0
      %345 = vmatmul.mubr.bf16.gmra.mrb[0].mxu0 %v282
      %v346 = vpop.f32.mrb[0].mxu0
      %v347 = vadd.f32 0.0, %v346
      %v348 = vpop.f32.mrb[0].mxu0
      %v349 = vadd.f32 0.0, %v348
      %v350 = vpop.f32.mrb[0].mxu0
      %v351 = vadd.f32 0.0, %v350
      %v352 = vpop.f32.mrb[0].mxu0
      %v353 = vadd.f32 0.0, %v352
      %354 = vmatprep.mubr.bf16.mxu0 0
      %355 = vmatmul.mubr.bf16.gmra.mrb[0].mxu0 %v285
      %v356 = vpop.f32.mrb[0].mxu0
      %v357 = vadd.f32 0.0, %v356
      %v358 = vpop.f32.mrb[0].mxu0
      %v359 = vadd.f32 0.0, %v358
      %v360 = vpop.f32.mrb[0].mxu0
      %v361 = vadd.f32 0.0, %v360
      %v362 = vpop.f32.mrb[0].mxu0
      %v363 = vadd.f32 0.0, %v362
      %364 = vmatprep.mubr.bf16.mxu0 0
      %365 = vmatmul.mubr.bf16.gmra.mrb[0].mxu0 %v288
      %v366 = vpop.f32.mrb[0].mxu0
      %v367 = vadd.f32 0.0, %v366
      %v368 = vpop.f32.mrb[0].mxu0
      %v369 = vadd.f32 0.0, %v368
      %v370 = vpop.f32.mrb[0].mxu0
      %v371 = vadd.f32 0.0, %v370
      %v372 = vpop.f32.mrb[0].mxu0
      %v373 = vadd.f32 0.0, %v372
      %374 = vmatprep.mubr.bf16.mxu0 0
      %375 = vmatmul.mubr.bf16.gmra.mrb[0].mxu0 %v291
      %v376 = vpop.f32.mrb[0].mxu0
      %v377 = vadd.f32 0.0, %v376
      %v378 = vpop.f32.mrb[0].mxu0
      %v379 = vadd.f32 0.0, %v378
      %v380 = vpop.f32.mrb[0].mxu0
      %v381 = vadd.f32 0.0, %v380
      %v382 = vpop.f32.mrb[0].mxu0
      %v383 = vadd.f32 0.0, %v382
      %384 = vmatprep.mubr.bf16.mxu0 0
      %385 = vmatmul.mubr.bf16.gmra.mrb[0].mxu0 %v294
      %v386 = vpop.f32.mrb[0].mxu0
      %v387 = vadd.f32 0.0, %v386
      %v388 = vpop.f32.mrb[0].mxu0
      %v389 = vadd.f32 0.0, %v388
      %v390 = vpop.f32.mrb[0].mxu0
      %v391 = vadd.f32 0.0, %v390
      %v392 = vpop.f32.mrb[0].mxu0
      %v393 = vadd.f32 0.0, %v392
      %394 = vmatprep.mubr.bf16.mxu0 0
      %395 = vmatmul.mubr.bf16.gmra.mrb[0].mxu0 %v297
      %v396 = vpop.f32.mrb[0].mxu0
      %v397 = vadd.f32 0.0, %v396
      %v398 = vpop.f32.mrb[0].mxu0
      %v399 = vadd.f32 0.0, %v398
      %v400 = vpop.f32.mrb[0].mxu0
      %v401 = vadd.f32 0.0, %v400
      %v402 = vpop.f32.mrb[0].mxu0
      %v403 = vadd.f32 0.0, %v402
      %404 = vmatprep.mubr.bf16.mxu0 0
      %405 = vmatmul.mubr.bf16.gmra.mrb[0].mxu0 %v300
      %v406 = vpop.f32.mrb[0].mxu0
      %v407 = vadd.f32 0.0, %v406
      %v408 = vpop.f32.mrb[0].mxu0
      %v409 = vadd.f32 0.0, %v408
      %v410 = vpop.f32.mrb[0].mxu0
      %v411 = vadd.f32 0.0, %v410
      %v412 = vpop.f32.mrb[0].mxu0
      %v413 = vadd.f32 0.0, %v412
      %414 = vmatprep.mubr.bf16.mxu0 0
      %415 = vmatmul.mubr.bf16.gmra.mrb[0].mxu0 %v303
      %v416 = vpop.f32.mrb[0].mxu0
      %v417 = vadd.f32 0.0, %v416
      %v418 = vpop.f32.mrb[0].mxu0
      %v419 = vadd.f32 0.0, %v418
      %v420 = vpop.f32.mrb[0].mxu0
      %v421 = vadd.f32 0.0, %v420
      %v422 = vpop.f32.mrb[0].mxu0
      %v423 = vadd.f32 0.0, %v422
      %424 = vdwg.mxu0
      %v427 = vunpack.c.l.b16 %v209
      %v428 = vunpack.c.l.b16 %v210
      %v429 = vpack.c.b16 %v428, %v427
      %v432 = vunpack.c.l.b16 %v225
      %v433 = vunpack.c.h.b16 %v225
      %v434 = vunpack.c.l.b16 %v226
      %v435 = vunpack.c.h.b16 %v226
      %v436 = vpack.c.b16 %v434, %v432
      %v437 = vpack.c.b16 %v435, %v433
      %v439 = vsel %vm280, %v429, 0
      %v442 = vsel %vm305, %v436, 0
      %v445 = vsel %vm305, %v437, 0
      %447 = vmatprep.subr.bf16.mxu0 %v445
      %448 = vmatpush1.bf16.msra.mxu0 %v442
      %449 = vmatprep.subr.bf16.mxu0 0
      %450 = vmatpush1.bf16.msra.mxu0 0
      %451 = vmatprep.subr.bf16.mxu0 0
      %452 = vmatpush1.bf16.msra.mxu0 0
      %453 = vmatprep.subr.bf16.mxu0 0
      %454 = vmatpush1.bf16.msra.mxu0 0
      %455 = vmatprep.subr.bf16.mxu0 0
      %456 = vmatpush1.bf16.msra.mxu0 0
      %457 = vmatprep.subr.bf16.mxu0 0
      %458 = vmatpush1.bf16.msra.mxu0 0
      %459 = vmatprep.subr.bf16.mxu0 0
      %460 = vmatpush1.bf16.msra.mxu0 0
      %461 = vmatprep.subr.bf16.mxu0 0
      %462 = vmatpush1.bf16.msra.mxu0 0
      %463 = vmatprep.subr.bf16.mxu0 0
      %464 = vmatpush1.bf16.msra.mxu0 0
      %465 = vmatprep.subr.bf16.mxu0 0
      %466 = vmatpush1.bf16.msra.mxu0 0
      %467 = vmatprep.subr.bf16.mxu0 0
      %468 = vmatpush1.bf16.msra.mxu0 0
      %469 = vmatprep.subr.bf16.mxu0 0
      %470 = vmatpush1.bf16.msra.mxu0 0
      %471 = vmatprep.subr.bf16.mxu0 0
      %472 = vmatpush1.bf16.msra.mxu0 0
      %473 = vmatprep.subr.bf16.mxu0 0
      %474 = vmatpush1.bf16.msra.mxu0 0
      %475 = vmatprep.subr.bf16.mxu0 0
      %476 = vmatpush1.bf16.msra.mxu0 0
      %477 = vmatprep.subr.bf16.mxu0 0
      %478 = vmatpush1.bf16.msra.mxu0 0
      %479 = vmatprep.mubr.bf16.mxu0 0
      %480 = vmatmul.mubr.bf16.gmra.mrb[0].mxu0 %v439
      %v481 = vpop.f32.mrb[0].mxu0
      %v482 = vadd.f32 %v347, %v481
      %v483 = vpop.f32.mrb[0].mxu0
      %v484 = vadd.f32 %v349, %v483
      %v485 = vpop.f32.mrb[0].mxu0
      %v486 = vadd.f32 %v351, %v485
      %v487 = vpop.f32.mrb[0].mxu0
      %v488 = vadd.f32 %v353, %v487
      %489 = vmatprep.mubr.bf16.mxu0 0
      %490 = vmatmul.mubr.bf16.gmra.mrb[0].mxu0 %v282
      %v491 = vpop.f32.mrb[0].mxu0
      %v492 = vadd.f32 %v357, %v491
      %v493 = vpop.f32.mrb[0].mxu0
      %v494 = vadd.f32 %v359, %v493
      %v495 = vpop.f32.mrb[0].mxu0
      %v496 = vadd.f32 %v361, %v495
      %v497 = vpop.f32.mrb[0].mxu0
      %v498 = vadd.f32 %v363, %v497
      %499 = vmatprep.mubr.bf16.mxu0 0
      %500 = vmatmul.mubr.bf16.gmra.mrb[0].mxu0 %v285
      %v501 = vpop.f32.mrb[0].mxu0
      %v502 = vadd.f32 %v367, %v501
      %v503 = vpop.f32.mrb[0].mxu0
      %v504 = vadd.f32 %v369, %v503
      %v505 = vpop.f32.mrb[0].mxu0
      %v506 = vadd.f32 %v371, %v505
      %v507 = vpop.f32.mrb[0].mxu0
      %v508 = vadd.f32 %v373, %v507
      %509 = vmatprep.mubr.bf16.mxu0 0
      %510 = vmatmul.mubr.bf16.gmra.mrb[0].mxu0 %v288
      %v511 = vpop.f32.mrb[0].mxu0
      %v512 = vadd.f32 %v377, %v511
      %v513 = vpop.f32.mrb[0].mxu0
      %v514 = vadd.f32 %v379, %v513
      %v515 = vpop.f32.mrb[0].mxu0
      %v516 = vadd.f32 %v381, %v515
      %v517 = vpop.f32.mrb[0].mxu0
      %v518 = vadd.f32 %v383, %v517
      %519 = vmatprep.mubr.bf16.mxu0 0
      %520 = vmatmul.mubr.bf16.gmra.mrb[0].mxu0 %v291
      %v521 = vpop.f32.mrb[0].mxu0
      %v522 = vadd.f32 %v387, %v521
      %v523 = vpop.f32.mrb[0].mxu0
      %v524 = vadd.f32 %v389, %v523
      %v525 = vpop.f32.mrb[0].mxu0
      %v526 = vadd.f32 %v391, %v525
      %v527 = vpop.f32.mrb[0].mxu0
      %v528 = vadd.f32 %v393, %v527
      %529 = vmatprep.mubr.bf16.mxu0 0
      %530 = vmatmul.mubr.bf16.gmra.mrb[0].mxu0 %v294
      %v531 = vpop.f32.mrb[0].mxu0
      %v532 = vadd.f32 %v397, %v531
      %v533 = vpop.f32.mrb[0].mxu0
      %v534 = vadd.f32 %v399, %v533
      %v535 = vpop.f32.mrb[0].mxu0
      %v536 = vadd.f32 %v401, %v535
      %v537 = vpop.f32.mrb[0].mxu0
      %v538 = vadd.f32 %v403, %v537
      %539 = vmatprep.mubr.bf16.mxu0 0
      %540 = vmatmul.mubr.bf16.gmra.mrb[0].mxu0 %v297
      %v541 = vpop.f32.mrb[0].mxu0
      %v542 = vadd.f32 %v407, %v541
      %v543 = vpop.f32.mrb[0].mxu0
      %v544 = vadd.f32 %v409, %v543
      %v545 = vpop.f32.mrb[0].mxu0
      %v546 = vadd.f32 %v411, %v545
      %v547 = vpop.f32.mrb[0].mxu0
      %v548 = vadd.f32 %v413, %v547
      %549 = vmatprep.mubr.bf16.mxu0 0
      %550 = vmatmul.mubr.bf16.gmra.mrb[0].mxu0 %v300
      %v551 = vpop.f32.mrb[0].mxu0
      %v552 = vadd.f32 %v417, %v551
      %v553 = vpop.f32.mrb[0].mxu0
      %v554 = vadd.f32 %v419, %v553
      %v555 = vpop.f32.mrb[0].mxu0
      %v556 = vadd.f32 %v421, %v555
      %v557 = vpop.f32.mrb[0].mxu0
      %v558 = vadd.f32 %v423, %v557
      %559 = vdwg.mxu0
      %v560 = vld [vmem:[%s197 + $0x10] sm:$0xf]
      %v561 = vld [vmem:[%s197 + $0x14] sm:$0xf]
      %v562 = vld [vmem:[%s197 + $0x18] sm:$0xf]
      %v563 = vld [vmem:[%s197 + $0x1c] sm:$0xf]
      %v564 = vld [vmem:[%s197 + $0x20] sm:$0xf]
      %v565 = vld [vmem:[%s197 + $0x24] sm:$0xf]
      %v566 = vld [vmem:[%s197 + $0x28] sm:$0xf]
      %v567 = vld [vmem:[%s197 + $0x2c] sm:$0xf]
      %v568 = vld [vmem:[%s197 + $0x30] sm:$0xf]
      %v569 = vld [vmem:[%s197 + $0x34] sm:$0xf]
      %v570 = vld [vmem:[%s197 + $0x38] sm:$0xf]
      %v571 = vld [vmem:[%s197 + $0x3c] sm:$0xf]
      %v572 = vld [vmem:[%s197 + $0x40] sm:$0xf]
      %v573 = vld [vmem:[%s197 + $0x44] sm:$0xf]
      %v574 = vld [vmem:[%s197 + $0x48] sm:$0xf]
      %v575 = vld [vmem:[%s197 + $0x4c] sm:$0xf]
      %s576 = scalar_lea.vmem %s1, 32
      %v577 = vld [vmem:[%s576] sm:$0xff]
      %v578 = vld [vmem:[%s576 + $0x8] sm:$0x33]
      %v595 = vunpack.c.l.b16 %v560
      %v596 = vunpack.c.l.b16 %v561
      %v597 = vunpack.c.l.b16 %v562
      %v598 = vunpack.c.l.b16 %v563
      %v599 = vunpack.c.l.b16 %v564
      %v600 = vunpack.c.l.b16 %v565
      %v601 = vunpack.c.l.b16 %v566
      %v602 = vunpack.c.l.b16 %v567
      %v603 = vunpack.c.l.b16 %v568
      %v604 = vunpack.c.l.b16 %v569
      %v605 = vunpack.c.l.b16 %v570
      %v606 = vunpack.c.l.b16 %v571
      %v607 = vunpack.c.l.b16 %v572
      %v608 = vunpack.c.l.b16 %v573
      %v609 = vunpack.c.l.b16 %v574
      %v610 = vunpack.c.l.b16 %v575
      %v611 = vpack.c.b16 %v596, %v595
      %v612 = vpack.c.b16 %v598, %v597
      %v613 = vpack.c.b16 %v600, %v599
      %v614 = vpack.c.b16 %v602, %v601
      %v615 = vpack.c.b16 %v604, %v603
      %v616 = vpack.c.b16 %v606, %v605
      %v617 = vpack.c.b16 %v608, %v607
      %v618 = vpack.c.b16 %v610, %v609
      %v621 = vunpack.c.l.b16 %v577
      %v622 = vunpack.c.h.b16 %v577
      %v623 = vunpack.c.l.b16 %v578
      %v624 = vunpack.c.h.b16 %v578
      %v625 = vpack.c.b16 %v623, %v621
      %v626 = vpack.c.b16 %v624, %v622
      %v628 = vsel %vm280, %v611, 0
      %v631 = vsel %vm280, %v612, 0
      %v634 = vsel %vm280, %v613, 0
      %v637 = vsel %vm280, %v614, 0
      %v640 = vsel %vm280, %v615, 0
      %v643 = vsel %vm280, %v616, 0
      %v646 = vsel %vm280, %v617, 0
      %v649 = vsel %vm280, %v618, 0
      %v652 = vsel %vm305, %v625, 0
      %v655 = vsel %vm305, %v626, 0
      %657 = vmatprep.subr.bf16.mxu0 %v655
      %658 = vmatpush1.bf16.msra.mxu0 %v652
      %659 = vmatprep.subr.bf16.mxu0 0
      %660 = vmatpush1.bf16.msra.mxu0 0
      %661 = vmatprep.subr.bf16.mxu0 0
      %662 = vmatpush1.bf16.msra.mxu0 0
      %663 = vmatprep.subr.bf16.mxu0 0
      %664 = vmatpush1.bf16.msra.mxu0 0
      %665 = vmatprep.subr.bf16.mxu0 0
      %666 = vmatpush1.bf16.msra.mxu0 0
      %667 = vmatprep.subr.bf16.mxu0 0
      %668 = vmatpush1.bf16.msra.mxu0 0
      %669 = vmatprep.subr.bf16.mxu0 0
      %670 = vmatpush1.bf16.msra.mxu0 0
      %671 = vmatprep.subr.bf16.mxu0 0
      %672 = vmatpush1.bf16.msra.mxu0 0
      %673 = vmatprep.subr.bf16.mxu0 0
      %674 = vmatpush1.bf16.msra.mxu0 0
      %675 = vmatprep.subr.bf16.mxu0 0
      %676 = vmatpush1.bf16.msra.mxu0 0
      %677 = vmatprep.subr.bf16.mxu0 0
      %678 = vmatpush1.bf16.msra.mxu0 0
      %679 = vmatprep.subr.bf16.mxu0 0
      %680 = vmatpush1.bf16.msra.mxu0 0
      %681 = vmatprep.subr.bf16.mxu0 0
      %682 = vmatpush1.bf16.msra.mxu0 0
      %683 = vmatprep.subr.bf16.mxu0 0
      %684 = vmatpush1.bf16.msra.mxu0 0
      %685 = vmatprep.subr.bf16.mxu0 0
      %686 = vmatpush1.bf16.msra.mxu0 0
      %687 = vmatprep.subr.bf16.mxu0 0
      %688 = vmatpush1.bf16.msra.mxu0 0
      %689 = vmatprep.mubr.bf16.mxu0 0
      %690 = vmatmul.mubr.bf16.gmra.mrb[0].mxu0 %v628
      %v691 = vpop.f32.mrb[0].mxu0
      %v692 = vadd.f32 0.0, %v691
      %v693 = vpop.f32.mrb[0].mxu0
      %v694 = vadd.f32 0.0, %v693
      %v695 = vpop.f32.mrb[0].mxu0
      %v696 = vadd.f32 0.0, %v695
      %v697 = vpop.f32.mrb[0].mxu0
      %v698 = vadd.f32 0.0, %v697
      %699 = vmatprep.mubr.bf16.mxu0 0
      %700 = vmatmul.mubr.bf16.gmra.mrb[0].mxu0 %v631
      %v701 = vpop.f32.mrb[0].mxu0
      %v702 = vadd.f32 0.0, %v701
      %v703 = vpop.f32.mrb[0].mxu0
      %v704 = vadd.f32 0.0, %v703
      %v705 = vpop.f32.mrb[0].mxu0
      %v706 = vadd.f32 0.0, %v705
      %v707 = vpop.f32.mrb[0].mxu0
      %v708 = vadd.f32 0.0, %v707
      %709 = vmatprep.mubr.bf16.mxu0 0
      %710 = vmatmul.mubr.bf16.gmra.mrb[0].mxu0 %v634
      %v711 = vpop.f32.mrb[0].mxu0
      %v712 = vadd.f32 0.0, %v711
      %v713 = vpop.f32.mrb[0].mxu0
      %v714 = vadd.f32 0.0, %v713
      %v715 = vpop.f32.mrb[0].mxu0
      %v716 = vadd.f32 0.0, %v715
      %v717 = vpop.f32.mrb[0].mxu0
      %v718 = vadd.f32 0.0, %v717
      %719 = vmatprep.mubr.bf16.mxu0 0
      %720 = vmatmul.mubr.bf16.gmra.mrb[0].mxu0 %v637
      %v721 = vpop.f32.mrb[0].mxu0
      %v722 = vadd.f32 0.0, %v721
      %v723 = vpop.f32.mrb[0].mxu0
      %v724 = vadd.f32 0.0, %v723
      %v725 = vpop.f32.mrb[0].mxu0
      %v726 = vadd.f32 0.0, %v725
      %v727 = vpop.f32.mrb[0].mxu0
      %v728 = vadd.f32 0.0, %v727
      %729 = vmatprep.mubr.bf16.mxu0 0
      %730 = vmatmul.mubr.bf16.gmra.mrb[0].mxu0 %v640
      %v731 = vpop.f32.mrb[0].mxu0
      %v732 = vadd.f32 0.0, %v731
      %v733 = vpop.f32.mrb[0].mxu0
      %v734 = vadd.f32 0.0, %v733
      %v735 = vpop.f32.mrb[0].mxu0
      %v736 = vadd.f32 0.0, %v735
      %v737 = vpop.f32.mrb[0].mxu0
      %v738 = vadd.f32 0.0, %v737
      %739 = vmatprep.mubr.bf16.mxu0 0
      %740 = vmatmul.mubr.bf16.gmra.mrb[0].mxu0 %v643
      %v741 = vpop.f32.mrb[0].mxu0
      %v742 = vadd.f32 0.0, %v741
      %v743 = vpop.f32.mrb[0].mxu0
      %v744 = vadd.f32 0.0, %v743
      %v745 = vpop.f32.mrb[0].mxu0
      %v746 = vadd.f32 0.0, %v745
      %v747 = vpop.f32.mrb[0].mxu0
      %v748 = vadd.f32 0.0, %v747
      %749 = vmatprep.mubr.bf16.mxu0 0
      %750 = vmatmul.mubr.bf16.gmra.mrb[0].mxu0 %v646
      %v751 = vpop.f32.mrb[0].mxu0
      %v752 = vadd.f32 0.0, %v751
      %v753 = vpop.f32.mrb[0].mxu0
      %v754 = vadd.f32 0.0, %v753
      %v755 = vpop.f32.mrb[0].mxu0
      %v756 = vadd.f32 0.0, %v755
      %v757 = vpop.f32.mrb[0].mxu0
      %v758 = vadd.f32 0.0, %v757
      %759 = vmatprep.mubr.bf16.mxu0 0
      %760 = vmatmul.mubr.bf16.gmra.mrb[0].mxu0 %v649
      %v761 = vpop.f32.mrb[0].mxu0
      %v762 = vadd.f32 0.0, %v761
      %v763 = vpop.f32.mrb[0].mxu0
      %v764 = vadd.f32 0.0, %v763
      %v765 = vpop.f32.mrb[0].mxu0
      %v766 = vadd.f32 0.0, %v765
      %v767 = vpop.f32.mrb[0].mxu0
      %v768 = vadd.f32 0.0, %v767
      %769 = vdwg.mxu0
      %v770 = vadd.f32 %v482, %v692
      %v771 = vadd.f32 %v484, %v694
      %v772 = vadd.f32 %v486, %v696
      %v773 = vadd.f32 %v488, %v698
      %v774 = vadd.f32 %v492, %v702
      %v775 = vadd.f32 %v494, %v704
      %v776 = vadd.f32 %v496, %v706
      %v777 = vadd.f32 %v498, %v708
      %v778 = vadd.f32 %v502, %v712
      %v779 = vadd.f32 %v504, %v714
      %v780 = vadd.f32 %v506, %v716
      %v781 = vadd.f32 %v508, %v718
      %v782 = vadd.f32 %v512, %v722
      %v783 = vadd.f32 %v514, %v724
      %v784 = vadd.f32 %v516, %v726
      %v785 = vadd.f32 %v518, %v728
      %v786 = vadd.f32 %v522, %v732
      %v787 = vadd.f32 %v524, %v734
      %v788 = vadd.f32 %v526, %v736
      %v789 = vadd.f32 %v528, %v738
      %v790 = vadd.f32 %v532, %v742
      %v791 = vadd.f32 %v534, %v744
      %v792 = vadd.f32 %v536, %v746
      %v793 = vadd.f32 %v538, %v748
      %v794 = vadd.f32 %v542, %v752
      %v795 = vadd.f32 %v544, %v754
      %v796 = vadd.f32 %v546, %v756
      %v797 = vadd.f32 %v548, %v758
      %v798 = vadd.f32 %v552, %v762
      %v799 = vadd.f32 %v554, %v764
      %v800 = vadd.f32 %v556, %v766
      %v801 = vadd.f32 %v558, %v768
      %v802 = vadd.f32 %v770, %v771
      %v803 = vadd.f32 %v772, %v773
      %v804 = vadd.f32 %v774, %v775
      %v805 = vadd.f32 %v776, %v777
      %v806 = vadd.f32 %v778, %v779
      %v807 = vadd.f32 %v780, %v781
      %v808 = vadd.f32 %v782, %v783
      %v809 = vadd.f32 %v784, %v785
      %v810 = vadd.f32 %v786, %v787
      %v811 = vadd.f32 %v788, %v789
      %v812 = vadd.f32 %v790, %v791
      %v813 = vadd.f32 %v792, %v793
      %v814 = vadd.f32 %v794, %v795
      %v815 = vadd.f32 %v796, %v797
      %v816 = vadd.f32 %v798, %v799
      %v817 = vadd.f32 %v800, %v801
      %v818 = vld [vmem:[%s2] sm:$0x1]
      %v820 = vlaneseq
      %v821 = vshrl.u32 %v820, 7
      %v822 = vsub.s32 0, %v821
      %v823 = vrot.slane %v818, %v822
      %v825 = vadd.f32 %v802, %v823
      %v826 = vadd.f32 %v803, %v823
      %v827 = vadd.f32 %v804, %v823
      %v828 = vadd.f32 %v805, %v823
      %v829 = vadd.f32 %v806, %v823
      %v830 = vadd.f32 %v807, %v823
      %v831 = vadd.f32 %v808, %v823
      %v832 = vadd.f32 %v809, %v823
      %v833 = vadd.f32 %v810, %v823
      %v834 = vadd.f32 %v811, %v823
      %v835 = vadd.f32 %v812, %v823
      %v836 = vadd.f32 %v813, %v823
      %v837 = vadd.f32 %v814, %v823
      %v838 = vadd.f32 %v815, %v823
      %v839 = vadd.f32 %v816, %v823
      %v840 = vadd.f32 %v817, %v823
      %v841 = vpack.c.bf16 %v826, %v825
      %v842 = vpack.c.bf16 %v828, %v827
      %v843 = vpack.c.bf16 %v830, %v829
      %v844 = vpack.c.bf16 %v832, %v831
      %v845 = vpack.c.bf16 %v834, %v833
      %v846 = vpack.c.bf16 %v836, %v835
      %v847 = vpack.c.bf16 %v838, %v837
      %v848 = vpack.c.bf16 %v840, %v839
      %v857 = vunpack.c.l.b16 %v841
      %v858 = vunpack.c.h.b16 %v841
      %v859 = vunpack.c.l.b16 %v842
      %v860 = vunpack.c.h.b16 %v842
      %v861 = vunpack.c.l.b16 %v843
      %v862 = vunpack.c.h.b16 %v843
      %v863 = vunpack.c.l.b16 %v844
      %v864 = vunpack.c.h.b16 %v844
      %v865 = vunpack.c.l.b16 %v845
      %v866 = vunpack.c.h.b16 %v845
      %v867 = vunpack.c.l.b16 %v846
      %v868 = vunpack.c.h.b16 %v846
      %v869 = vunpack.c.l.b16 %v847
      %v870 = vunpack.c.h.b16 %v847
      %v871 = vunpack.c.l.b16 %v848
      %v872 = vunpack.c.h.b16 %v848
      %v873 = vpack.c.b16 %v857, %v857
      %v874 = vpack.c.b16 %v858, %v858
      %v875 = vpack.c.b16 %v859, %v859
      %v876 = vpack.c.b16 %v860, %v860
      %v877 = vpack.c.b16 %v861, %v861
      %v878 = vpack.c.b16 %v862, %v862
      %v879 = vpack.c.b16 %v863, %v863
      %v880 = vpack.c.b16 %v864, %v864
      %v881 = vpack.c.b16 %v865, %v865
      %v882 = vpack.c.b16 %v866, %v866
      %v883 = vpack.c.b16 %v867, %v867
      %v884 = vpack.c.b16 %v868, %v868
      %v885 = vpack.c.b16 %v869, %v869
      %v886 = vpack.c.b16 %v870, %v870
      %v887 = vpack.c.b16 %v871, %v871
      %v888 = vpack.c.b16 %v872, %v872
      %905 = vst [vmem:[%s206] sm:$0xf] %v873
      %906 = vst [vmem:[%s206 + $0x4] sm:$0xf] %v874
      %907 = vst [vmem:[%s206 + $0x8] sm:$0xf] %v875
      %908 = vst [vmem:[%s206 + $0xc] sm:$0xf] %v876
      %909 = vst [vmem:[%s206 + $0x10] sm:$0xf] %v877
      %910 = vst [vmem:[%s206 + $0x14] sm:$0xf] %v878
      %911 = vst [vmem:[%s206 + $0x18] sm:$0xf] %v879
      %912 = vst [vmem:[%s206 + $0x1c] sm:$0xf] %v880
      %913 = vst [vmem:[%s206 + $0x20] sm:$0xf] %v881
      %914 = vst [vmem:[%s206 + $0x24] sm:$0xf] %v882
      %915 = vst [vmem:[%s206 + $0x28] sm:$0xf] %v883
      %916 = vst [vmem:[%s206 + $0x2c] sm:$0xf] %v884
      %917 = vst [vmem:[%s206 + $0x30] sm:$0xf] %v885
      %918 = vst [vmem:[%s206 + $0x34] sm:$0xf] %v886
      %919 = vst [vmem:[%s206 + $0x38] sm:$0xf] %v887
      %920 = vst [vmem:[%s206 + $0x3c] sm:$0xf] %v888
      %s921 = smul.u32 16, %s19
      %p922 = scmp.lt.s32.totalorder %s18, 1
      %s923 = scalar_select %p922, %s18, 1
      %p924 = scmp.lt.s32.totalorder %s921, 31
      %s925 = scalar_select %p924, %s921, 31
      %s926 = smul.addr %s923, 32
      %s927 = sadd.s32 %s925, %s926
      %s928 = smul.addr %s927, 4
      %s929 = scalar_lea.vmem %s3, %s928
      // Predicated region
      $region33: #{conv_lora_forward.1} parent=31 // pred_check
        %p930 = pneg %p116
      $region34: #{conv_lora_forward.1} parent=31 // pred_check_branch
        %932 = sbr.rel (%p930) target = $region36
      $region35: #{conv_lora_forward.1} parent=31 // pred_region
        %s933 = smul.u32 16, %s19
      $region36: #{conv_lora_forward.1} parent=31 // pred_fallthru
        _
    $region32: #{conv_lora_forward.1} parent=5 // pred_fallthru
      _
    %p934 = scmp.le.s32.totalorder 2, %s9
    // Predicated region
    $region37: #{conv_lora_forward.1} parent=5 // pred_check
      %p935 = pneg %p934
    $region38: #{conv_lora_forward.1} parent=5 // pred_check_branch
      %937 = sbr.rel (%p935) target = $region40
    $region39: #{conv_lora_forward.1} parent=5 // pred_region
      %s938 = ssub.s32 %s9, 2
      // Predicated region
      $region41: #{conv_lora_forward.1} parent=39 // pred_check
        %p939 = pneg %p122
      $region42: #{conv_lora_forward.1} parent=39 // pred_check_branch
        %941 = sbr.rel (%p939) target = $region44
      $region43: #{conv_lora_forward.1} parent=39 // pred_region
        %s942 = smul.u32 16, %s21
        %p943 = scmp.lt.s32.totalorder %s20, 1
        %s944 = scalar_select %p943, %s20, 1
        %p945 = scmp.lt.s32.totalorder %s942, 31
        %s946 = scalar_select %p945, %s942, 31
        %s947 = smul.addr %s944, 32
        %s948 = sadd.s32 %s946, %s947
        %s949 = smul.addr %s948, 4
        %s950 = scalar_lea.vmem %s3, %s949
      $region44: #{conv_lora_forward.1} parent=39 // pred_fallthru
        _
    $region40: #{conv_lora_forward.1} parent=5 // pred_fallthru
      _
  $region6: #{conv_lora_forward.1} parent=0 // loop_footer
    %s13 = sadd.s32 1, %s9
  $region7: #{conv_lora_forward.1} parent=0 // loop_footer_branch
    %8 = sbr.rel target = $region3
  $region8: #{conv_lora_forward.1} parent=0 // loop_exit
    _

</llo_original>
